<compile_context>
chip_gen: v6e
topology: v6e:2x2x1
jax: 0.10.0
libtpu: 0.0.40
codegen_flags: <defaults>
</compile_context>

<pallas_src>
import functools

import jax
import jax.numpy as jnp
from jax import lax
from jax.experimental import pallas as pl
from jax.experimental.pallas import tpu as pltpu


def _make_kl_div_kernel(n_rows_total: int, tile_rows: int, needs_mask: bool):
    def kernel(logits_ref, target_ref, partial_ref):
        x = logits_ref[...]
        t = target_ref[...]
        # Cast only if needed (zero-cost for f32 inputs; keeps compute in f32
        # for bf16 inputs — safe on v5e which has no bf16 VPU/EUP).
        if x.dtype != jnp.float32:
            x = x.astype(jnp.float32)
        if t.dtype != jnp.float32:
            t = t.astype(jnp.float32)

        if needs_mask:
            # Last tile may read past the end of the batch; zero those rows so
            # they contribute nothing (t=0 -> pointwise term is exactly 0) and
            # so any padded garbage cannot produce NaN/Inf.
            i = pl.program_id(0)
            row = lax.broadcasted_iota(jnp.int32, (tile_rows, 1), 0)
            valid = (i * tile_rows + row) < n_rows_total
            x = jnp.where(valid, x, 0.0)
            t = jnp.where(valid, t, 0.0)

        # Numerically stable log_softmax pieces along the class (lane) axis.
        m = jnp.max(x, axis=-1, keepdims=True)
        z = x - m
        lse = jnp.log(jnp.sum(jnp.exp(z), axis=-1, keepdims=True))  # (tb, 1)

        # Pointwise term: xlogy(t, t) - t * (z - lse)
        #   = t * (log(safe_t) - z) + t * lse
        # Fold the lse part into a per-row correction so the per-element path
        # is one select, one log (EUP), one sub and one mul (no broadcasted
        # lse subtract across every lane).  For t == 0 the term is exactly 0,
        # matching xlogy's convention.
        safe_t = jnp.where(t > 0.0, t, 1.0)
        elem = t * (jnp.log(safe_t) - z)                    # (tb, C)
        row_sum = jnp.sum(elem, axis=-1, keepdims=True)     # (tb, 1)
        row_t = jnp.sum(t, axis=-1, keepdims=True)          # (tb, 1)

        # Per-tile partial sum (f32). Final mean is computed in the wrapper.
        partial_ref[0, 0] = jnp.sum(row_sum + lse * row_t)

    return kernel


def _choose_row_tile(n_rows: int, n_cols: int, itemsize: int,
                     vmem_budget_bytes: int = 8 * 1024 * 1024) -> int:
    """Pick a batch tile so 2 inputs x 2 pipeline buffers fit a modest VMEM
    budget (comfortable under the default scoped limit on v5e/v6e/v7x)."""
    per_row = n_cols * itemsize
    max_rows = max(8, vmem_budget_bytes // (4 * per_row))
    tb = min(n_rows, 2048, max_rows)
    if tb < n_rows:
        # Block shape must be a multiple of 8 (sublanes) unless it covers the
        # full axis.
        tb = max(8, (tb // 8) * 8)
    return tb


@functools.partial(jax.jit, static_argnames=("row_tile",))
def kl_div_loss(model_output: jax.Array, target: jax.Array,
                row_tile: int | None = None) -> jax.Array:
    """KL divergence with softmax, matching the PyTorch KLDivLoss module."""
    assert model_output.shape == target.shape
    assert model_output.ndim == 2, "layout: (batch, classes)"
    B, C = model_output.shape
    itemsize = jnp.dtype(model_output.dtype).itemsize

    tb = row_tile if row_tile is not None else _choose_row_tile(B, C, itemsize)
    tb = min(tb, B)
    num_tiles = pl.cdiv(B, tb)
    needs_mask = (B % tb) != 0

    kernel = _make_kl_div_kernel(B, tb, needs_mask)

    cost = pl.CostEstimate(
        flops=6 * B * C,
        transcendentals=2 * B * C,
        bytes_accessed=2 * B * C * itemsize + num_tiles * 4,
    )

    partials = pl.pallas_call(
        kernel,
        out_shape=jax.ShapeDtypeStruct((num_tiles, 1), jnp.float32),
        grid=(num_tiles,),
        in_specs=[
            pl.BlockSpec((tb, C), lambda i: (i, 0)),
            pl.BlockSpec((tb, C), lambda i: (i, 0)),
        ],
        out_specs=pl.BlockSpec((1, 1), lambda i: (i, 0),
                               memory_space=pltpu.MemorySpace.SMEM),
        compiler_params=pltpu.CompilerParams(
            dimension_semantics=("parallel",)),
        cost_estimate=cost,
    )(model_output, target)

    return jnp.sum(partials) / jnp.float32(B * C)


def _reference(model_output, target):
    # Pure-JAX reference for sanity checking.
    logp = jax.nn.log_softmax(model_output.astype(jnp.float32), axis=1)
    t = target.astype(jnp.float32)
    xlogy = jnp.where(t > 0, t * jnp.log(jnp.where(t > 0, t, 1.0)), 0.0)
    return jnp.mean(xlogy - t * logp)


if __name__ == "__main__":
    key = jax.random.PRNGKey(0)
    k1, k2, k3, k4 = jax.random.split(key, 4)

    # Case 1: small, tile-friendly (8 sublanes x 128 lanes), single tile.
    B1, C1 = 8, 128
    x1 = jax.random.normal(k1, (B1, C1), dtype=jnp.float32)
    t1 = jax.nn.softmax(jax.random.normal(k2, (B1, C1), dtype=jnp.float32),
                        axis=1)
    loss1 = kl_div_loss(x1, t1)
    jax.block_until_ready(loss1)
    ref1 = _reference(x1, t1)
    assert jnp.allclose(loss1, ref1, rtol=1e-5, atol=1e-6), (loss1, ref1)

    # Case 2: batch not a multiple of the tile -> exercises the grid,
    # "parallel" per-tile partials, and the padded-row mask.
    B2, C2 = 20, 128
    x2 = jax.random.normal(k3, (B2, C2), dtype=jnp.float32)
    t2 = jax.nn.softmax(jax.random.normal(k4, (B2, C2), dtype=jnp.float32),
                        axis=1)
    loss2 = kl_div_loss(x2, t2, row_tile=8)
    jax.block_until_ready(loss2)
    ref2 = _reference(x2, t2)
    assert jnp.allclose(loss2, ref2, rtol=1e-5, atol=1e-6), (loss2, ref2)

    # Case 3: bf16 inputs (halves HBM bytes; compute stays f32 in-kernel).
    x3 = x2.astype(jnp.bfloat16)
    t3 = t2.astype(jnp.bfloat16)
    loss3 = kl_div_loss(x3, t3, row_tile=8)
    jax.block_until_ready(loss3)
    ref3 = _reference(x3, t3)
    assert jnp.allclose(loss3, ref3, rtol=1e-5, atol=1e-6), (loss3, ref3)

    print("KERNEL_OK")
</pallas_src>

<mosaic_0001>
module attributes {stable_mosaic.version = 11 : i64} {
  func.func @kernel(%arg0: i32, %arg1: memref<8x128xf32, #tpu.memory_space<vmem>>, %arg2: memref<8x128xf32, #tpu.memory_space<vmem>>, %arg3: memref<1x1xf32, #tpu.memory_space<smem>>) attributes {dimension_semantics = [#tpu.dimension_semantics<parallel>], iteration_bounds = array<i64: 1>, scalar_prefetch = 0 : i64, scratch_operands = 0 : i64, tpu.core_type = #tpu.core_type<tc>, window_params = [{transform_indices = @transform_0, window_bounds = array<i64: 8, 128>}, {transform_indices = @transform_1, window_bounds = array<i64: 8, 128>}, {transform_indices = @transform_2, window_bounds = array<i64: 1, 1>}]} {
    %c0 = arith.constant 0 : index
    %c0_0 = arith.constant 0 : index
    %0 = vector.load %arg1[%c0, %c0_0] : memref<8x128xf32, #tpu.memory_space<vmem>>, vector<8x128xf32>
    %c0_1 = arith.constant 0 : index
    %c0_2 = arith.constant 0 : index
    %1 = vector.load %arg2[%c0_1, %c0_2] : memref<8x128xf32, #tpu.memory_space<vmem>>, vector<8x128xf32>
    %cst = arith.constant dense<0xFF800000> : vector<8xf32>
    %2 = vector.multi_reduction <maximumf>, %0, %cst [1] : vector<8x128xf32> to vector<8xf32>
    %3 = vector.shape_cast %2 : vector<8xf32> to vector<8x1xf32>
    %4 = vector.broadcast %3 : vector<8x1xf32> to vector<8x128xf32>
    %5 = arith.subf %0, %4 : vector<8x128xf32>
    %6 = math.exp %5 : vector<8x128xf32>
    %cst_3 = arith.constant dense<0.000000e+00> : vector<8xf32>
    %7 = vector.multi_reduction <add>, %6, %cst_3 [1] : vector<8x128xf32> to vector<8xf32>
    %8 = vector.shape_cast %7 : vector<8xf32> to vector<8x1xf32>
    %9 = math.log %8 : vector<8x1xf32>
    %cst_4 = arith.constant 0.000000e+00 : f32
    %10 = vector.broadcast %cst_4 : f32 to vector<8x128xf32>
    %11 = arith.cmpf ogt, %1, %10 : vector<8x128xf32>
    %cst_5 = arith.constant 1.000000e+00 : f32
    %12 = vector.broadcast %cst_5 : f32 to vector<8x128xf32>
    %13 = arith.select %11, %1, %12 : vector<8x128xi1>, vector<8x128xf32>
    %14 = math.log %13 : vector<8x128xf32>
    %15 = arith.subf %14, %5 : vector<8x128xf32>
    %16 = arith.mulf %1, %15 : vector<8x128xf32>
    %cst_6 = arith.constant dense<0.000000e+00> : vector<8xf32>
    %17 = vector.multi_reduction <add>, %16, %cst_6 [1] : vector<8x128xf32> to vector<8xf32>
    %18 = vector.shape_cast %17 : vector<8xf32> to vector<8x1xf32>
    %cst_7 = arith.constant dense<0.000000e+00> : vector<8xf32>
    %19 = vector.multi_reduction <add>, %1, %cst_7 [1] : vector<8x128xf32> to vector<8xf32>
    %20 = vector.shape_cast %19 : vector<8xf32> to vector<8x1xf32>
    %21 = arith.mulf %9, %20 : vector<8x1xf32>
    %22 = arith.addf %18, %21 : vector<8x1xf32>
    %23 = vector.shape_cast %22 : vector<8x1xf32> to vector<1x8x1xf32>
    %cst_8 = arith.constant dense<0.000000e+00> : vector<1xf32>
    %24 = vector.multi_reduction <add>, %23, %cst_8 [1, 2] : vector<1x8x1xf32> to vector<1xf32>
    %25 = vector.shape_cast %24 : vector<1xf32> to vector<1x1x1xf32>
    %26 = vector.extract %25[0, 0, 0] : f32 from vector<1x1x1xf32>
    %c0_9 = arith.constant 0 : index
    %c0_10 = arith.constant 0 : index
    %27 = memref.load %arg3[%c0_9, %c0_10] : memref<1x1xf32, #tpu.memory_space<smem>>
    memref.store %26, %arg3[%c0_9, %c0_10] : memref<1x1xf32, #tpu.memory_space<smem>>
    return
  }
  func.func @transform_0(%arg0: i32) -> (i32, i32) {
    %c0_i32 = arith.constant 0 : i32
    %c0_i32_0 = arith.constant 0 : i32
    return %arg0, %c0_i32 : i32, i32
  }
  func.func @transform_1(%arg0: i32) -> (i32, i32) {
    %c0_i32 = arith.constant 0 : i32
    %c0_i32_0 = arith.constant 0 : i32
    return %arg0, %c0_i32 : i32, i32
  }
  func.func @transform_2(%arg0: i32) -> (i32, i32) {
    %c0_i32 = arith.constant 0 : i32
    %c0_i32_0 = arith.constant 0 : i32
    return %arg0, %c0_i32 : i32, i32
  }
}

</mosaic_0001>

<llo_original>
// kernel: kl_div_loss.1
$region0: #{kl_div_loss.1}
  #allocation0 [shape = 'u32[]', space=smem, size = 0x4, offset = 0x4, fixed_abs, tag = 'smem constant byte address 0x4 - core index']
  #allocation1 [shape = 'u32[144,128]{1,0:T(1,128)}', space=vmem, size = 0x12000, scoped, tag = 'internal scratch']
  %s0 = inlined_call_operand.hbm [shape: f32[8,128], index: 0, kind: input, shape index: {}]
  %s1 = inlined_call_operand.hbm [shape: f32[8,128], index: 1, kind: input, shape index: {}]
  %s2 = inlined_call_operand.hbm [shape: f32[1,1], index: 2, kind: output, shape index: {}]
  %s3 = sld [smem:[#allocation0]]
  $region26: #{kl_div_loss.1} parent=0
    _
  %s5 = ssub.s32 1, %s3
  %s6 = scalar_select 0, %s5, %s3
  $region1: #{kl_div_loss.1} parent=0
    #allocation2 [shape = 'u8[4096]{0}', space=vmem, size = 0x1000, scoped, tag = 'input window, operand 0, single buffered']
    #allocation3 [shape = 's32[1]{0}', space=sflag, size = 0x4, scoped, tag = 'scoped memory for kl_div_loss.1']
    #allocation4 [shape = 's32[1]{0}', space=sflag, size = 0x4, scoped, tag = 'scoped memory for kl_div_loss.1']
    #allocation5 [shape = 'u8[4096]{0}', space=vmem, size = 0x1000, scoped, tag = 'input window, operand 1, single buffered']
    #allocation6 [shape = 's32[1]{0}', space=sflag, size = 0x4, scoped, tag = 'scoped memory for kl_div_loss.1']
    #allocation7 [shape = 'u8[512]{0}', space=smem, size = 0x200, scoped, tag = 'output window, operand 0, single buffered']
    %7 = vsyncpa [#allocation3], 0
    %8 = vsyncpa [#allocation6], 0
    %9 = vsyncpa [#allocation4], 0
    // Predicated region
    $region2: #{kl_div_loss.1} parent=1 // pred_check
      _
    $region3: #{kl_div_loss.1} parent=1 // pred_check_branch
      %11 = sbr.rel (0) target = $region5
    $region4: #{kl_div_loss.1} parent=1 // pred_region
      %s13 = ssub.s32 128, 128
      %14 = vsyncadd [#allocation3], %s13
      %s16 = sshll.u32 [#allocation2], 4
      %s17 = int_to_ptr.vmem [resolvable:$true] %s16
      %19 = dma.hbm_to_vmem [thread:$0]  %s0, 128, %s17, [#allocation3]
    $region5: #{kl_div_loss.1} parent=1 // pred_fallthru
      _
    // Predicated region
    $region6: #{kl_div_loss.1} parent=1 // pred_check
      _
    $region7: #{kl_div_loss.1} parent=1 // pred_check_branch
      %21 = sbr.rel (0) target = $region9
    $region8: #{kl_div_loss.1} parent=1 // pred_region
      %s23 = ssub.s32 128, 128
      %24 = vsyncadd [#allocation6], %s23
      %s26 = sshll.u32 [#allocation5], 4
      %s27 = int_to_ptr.vmem [resolvable:$true] %s26
      %29 = dma.hbm_to_vmem [thread:$0]  %s1, 128, %s27, [#allocation6]
    $region9: #{kl_div_loss.1} parent=1 // pred_fallthru
      _
    // Predicated region
    $region10: #{kl_div_loss.1} parent=1 // pred_check
      _
    $region11: #{kl_div_loss.1} parent=1 // pred_check_branch
      %31 = sbr.rel (0) target = $region13
    $region12: #{kl_div_loss.1} parent=1 // pred_region
      %32 = dma.done [#allocation3], 128
    $region13: #{kl_div_loss.1} parent=1 // pred_fallthru
      _
    // Predicated region
    $region14: #{kl_div_loss.1} parent=1 // pred_check
      _
    $region15: #{kl_div_loss.1} parent=1 // pred_check_branch
      %34 = sbr.rel (0) target = $region17
    $region16: #{kl_div_loss.1} parent=1 // pred_region
      %35 = dma.done [#allocation6], 128
    $region17: #{kl_div_loss.1} parent=1 // pred_fallthru
      _
    %v36 = vld [vmem:[#allocation2] sm:$0xff]
    %v37 = vld [vmem:[#allocation5] sm:$0xff]
    %38 = vmax.xlane.f32.xlu0 %v36
    %v39 = vpop.xlane.xlu0 %38
    %v40 = vsub.f32 %v36, %v39
    %v41 = vmul.f32 %v40, 1.442695
    %v42 = vpow.pop %v41
    %43 = vadd.xlane.f32.xlu0 %v42
    %v44 = vpop.xlane.xlu0 %43
    %v45 = vlog2.pop %v44
    %v46 = vmul.f32 %v45, 0.6931472
    %vm47 = vcmp.gt.f32.partialorder %v37, 0.0
    %v48 = vsel %vm47, %v37, 1.0
    %v49 = vlog2.pop %v48
    %v50 = vmul.f32 %v49, 0.6931472
    %v51 = vsub.f32 %v50, %v40
    %v52 = vmul.f32 %v37, %v51
    %53 = vadd.xlane.f32.xlu0 %v52
    %v54 = vpop.xlane.xlu0 %53
    %55 = vadd.xlane.f32.xlu0 %v37
    %v56 = vpop.xlane.xlu0 %55
    %v57 = vmul.f32 %v46, %v56
    %v58 = vadd.f32 %v54, %v57
    %vm59 = vcmask 7168
    %v60 = vsel %vm59, %v58, 0.0
    %61 = vadd.xlane.f32.xlu0 %v60
    %v62 = vpop.xlane.xlu0 %61
    %v63 = vrot.slane %v62, 4
    %v64 = vadd.f32 %v62, %v63
    %v65 = vrot.slane %v64, 2
    %v66 = vadd.f32 %v64, %v65
    %v67 = vrot.slane %v66, 1
    %v68 = vadd.f32 %v66, %v67
    %s69 = vtos %v68
    %s70 = scalar_lea.smem [#allocation7], 0
    %71 = sst [smem:[%s70]] %s69
    // Predicated region
    $region18: #{kl_div_loss.1} parent=1 // pred_check
      _
    $region19: #{kl_div_loss.1} parent=1 // pred_check_branch
      %73 = sbr.rel (0) target = $region21
    $region20: #{kl_div_loss.1} parent=1 // pred_region
      %s75 = ssub.s32 16, 16
      %76 = vsyncadd [#allocation4], %s75
      %79 = dma.smem_to_hbm [#allocation7], 16, %s2, [#allocation4]
    $region21: #{kl_div_loss.1} parent=1 // pred_fallthru
      _
    // Predicated region
    $region22: #{kl_div_loss.1} parent=1 // pred_check
      _
    $region23: #{kl_div_loss.1} parent=1 // pred_check_branch
      %81 = sbr.rel (0) target = $region25
    $region24: #{kl_div_loss.1} parent=1 // pred_region
      %82 = dma.done [#allocation4], 16
    $region25: #{kl_div_loss.1} parent=1 // pred_fallthru
      _
    %83 = sfence
    %84 = vsyncpa [#allocation3], 1
    %85 = vsyncpa [#allocation6], 1
    %86 = vsyncpa [#allocation4], 1

</llo_original>
